<compile_context>
chip_gen: v5e
topology: v5e:2x2
jax: 0.10.0
libtpu: 0.0.40
codegen_flags: <defaults>
</compile_context>

<pallas_src>
import jax
import jax.numpy as jnp
from jax.experimental import pallas as pl
from jax.experimental.pallas import tpu as pltpu


def scale_permute_kernel(x_ref, s_ref, o_ref):
    # x_ref: (HW, C)  input block, channels on lanes
    # s_ref: (1,  C)  per-channel scale (sublane-broadcast multiply: cheap)
    # o_ref: (C, HW)  output block, channels on sublanes (NCHW layout, N=1)
    y = x_ref[...] * s_ref[...]              # VPU: broadcast multiply over rows
    o_ref[...] = jnp.transpose(y, (1, 0))    # XLU: channel dim to front


def permute_mul(x_nhwc: jax.Array, layer_scale: jax.Array) -> jax.Array:
    """x_nhwc: (N, H, W, C) f32; layer_scale: (C, 1, 1) f32 -> (N, C, H, W)."""
    N, H, W, C = x_nhwc.shape
    assert N == 1, "kernel written for N == 1 (as in the reference module)"
    HW = H * W

    x2d = x_nhwc.reshape(HW, C)              # metadata-only reshape (contiguous)
    s2d = layer_scale.reshape(1, C)          # (C,1,1) -> (1,C), channel order kept

    out2d = pl.pallas_call(
        scale_permute_kernel,
        out_shape=jax.ShapeDtypeStruct((C, HW), x_nhwc.dtype),
        grid_spec=pltpu.PrefetchScalarGridSpec(
            num_scalar_prefetch=0,
            grid=(1,),                                        # single step: whole op in one block
            in_specs=[
                pl.BlockSpec((HW, C), lambda i: (0, 0)),      # full input block
                pl.BlockSpec((1, C), lambda i: (0, 0)),       # scale fetched once
            ],
            out_specs=pl.BlockSpec((C, HW), lambda i: (0, 0)),
        ),
        compiler_params=pltpu.CompilerParams(
            dimension_semantics=("arbitrary",)),
    )(x2d, s2d)

    return out2d.reshape(N, C, H, W)         # metadata-only reshape (contiguous)


if __name__ == "__main__":
    key = jax.random.PRNGKey(0)
    k_x, k_s = jax.random.split(key)

    N, H, W, C = 1, 7, 7, 1024
    x416 = jax.random.normal(k_x, (N, H, W, C), dtype=jnp.float32)
    # torch.rand -> uniform [0, 1)
    layer_scale = jax.random.uniform(k_s, (C, 1, 1), dtype=jnp.float32)

    out = permute_mul(x416, layer_scale)
    out = jax.block_until_ready(out)

    # Reference semantics check (pure JAX, mirrors the PyTorch forward).
    ref = layer_scale[None, :, :, :] * jnp.transpose(x416, (0, 3, 1, 2))
    assert out.shape == (N, C, H, W), out.shape
    assert jnp.allclose(out, ref, atol=1e-6, rtol=1e-6), "mismatch vs reference"

    print("KERNEL_OK")
</pallas_src>

<mosaic_0001>
module attributes {stable_mosaic.version = 11 : i64} {
  func.func @scale_permute_kernel(%arg0: i32, %arg1: memref<49x1024xf32, #tpu.memory_space<vmem>>, %arg2: memref<1x1024xf32, #tpu.memory_space<vmem>>, %arg3: memref<1024x49xf32, #tpu.memory_space<vmem>>) attributes {dimension_semantics = [#tpu.dimension_semantics<arbitrary>], iteration_bounds = array<i64: 1>, scalar_prefetch = 0 : i64, scratch_operands = 0 : i64, tpu.core_type = #tpu.core_type<tc>, window_params = [{pipeline_mode = #tpu.pipeline_mode<synchronous>, transform_indices = @transform_0, window_bounds = array<i64: 49, 1024>}, {pipeline_mode = #tpu.pipeline_mode<synchronous>, transform_indices = @transform_1, window_bounds = array<i64: 1, 1024>}, {pipeline_mode = #tpu.pipeline_mode<synchronous>, transform_indices = @transform_2, window_bounds = array<i64: 1024, 49>}]} {
    %c0 = arith.constant 0 : index
    %c0_0 = arith.constant 0 : index
    %0 = vector.load %arg1[%c0, %c0_0] : memref<49x1024xf32, #tpu.memory_space<vmem>>, vector<49x1024xf32>
    %c0_1 = arith.constant 0 : index
    %c0_2 = arith.constant 0 : index
    %1 = vector.load %arg2[%c0_1, %c0_2] : memref<1x1024xf32, #tpu.memory_space<vmem>>, vector<1x1024xf32>
    %2 = vector.broadcast %1 : vector<1x1024xf32> to vector<49x1024xf32>
    %3 = arith.mulf %0, %2 : vector<49x1024xf32>
    %4 = tpu.transpose %3, [1, 0] : vector<49x1024xf32> -> vector<1024x49xf32>
    %c0_3 = arith.constant 0 : index
    %c0_4 = arith.constant 0 : index
    %5 = vector.load %arg3[%c0_3, %c0_4] : memref<1024x49xf32, #tpu.memory_space<vmem>>, vector<1024x49xf32>
    tpu.vector_store %arg3[%c0_3, %c0_4], %4 {strides = array<i32>} : memref<1024x49xf32, #tpu.memory_space<vmem>>, vector<1024x49xf32>,
    return
  }
  func.func @transform_0(%arg0: i32) -> (i32, i32) {
    %c0_i32 = arith.constant 0 : i32
    %c0_i32_0 = arith.constant 0 : i32
    %c0_i32_1 = arith.constant 0 : i32
    return %c0_i32, %c0_i32_0 : i32, i32
  }
  func.func @transform_1(%arg0: i32) -> (i32, i32) {
    %c0_i32 = arith.constant 0 : i32
    %c0_i32_0 = arith.constant 0 : i32
    %c0_i32_1 = arith.constant 0 : i32
    return %c0_i32, %c0_i32_0 : i32, i32
  }
  func.func @transform_2(%arg0: i32) -> (i32, i32) {
    %c0_i32 = arith.constant 0 : i32
    %c0_i32_0 = arith.constant 0 : i32
    %c0_i32_1 = arith.constant 0 : i32
    return %c0_i32, %c0_i32_0 : i32, i32
  }
}

</mosaic_0001>

<llo_original>
// kernel: tpu_custom_call.1
$region0: #{tpu_custom_call.1}
  #allocation0 [shape = 'u32[]', space=smem, size = 0x4, offset = 0x4, fixed_abs, tag = 'smem constant byte address 0x4 - core index']
  #allocation1 [shape = 'u32[72,128]{1,0:T(1,128)}', space=vmem, size = 0x9000, scoped, tag = 'internal scratch']
  %s0 = inlined_call_operand.hbm [shape: f32[49,1024], index: 0, kind: input, shape index: {}]
  %s1 = inlined_call_operand.hbm [shape: f32[1,1024], index: 1, kind: input, shape index: {}]
  %s2 = inlined_call_operand.vmem [shape: f32[1024,49], index: 2, kind: output, shape index: {}]
  %s3 = sld [smem:[#allocation0]]
  $region26: #{tpu_custom_call.1} parent=0
    _
  %s5 = ssub.s32 1, %s3
  %s6 = scalar_select 0, %s5, %s3
  $region1: #{tpu_custom_call.1} parent=0
    #allocation2 [shape = 'u8[229376]{0}', space=vmem, size = 0x38000, scoped, tag = 'input window, operand 0, single buffered']
    #allocation3 [shape = 's32[1]{0}', space=sflag, size = 0x4, scoped, tag = 'scoped memory for tpu_custom_call.1']
    #allocation4 [shape = 'u8[4096]{0}', space=vmem, size = 0x1000, scoped, tag = 'input window, operand 1, single buffered']
    #allocation5 [shape = 's32[1]{0}', space=sflag, size = 0x4, scoped, tag = 'scoped memory for tpu_custom_call.1']
    %7 = vsyncpa [#allocation3], 0
    %8 = vsyncpa [#allocation5], 0
    // Predicated region
    $region2: #{tpu_custom_call.1} parent=1 // pred_check
      _
    $region3: #{tpu_custom_call.1} parent=1 // pred_check_branch
      %10 = sbr.rel (0) target = $region5
    $region4: #{tpu_custom_call.1} parent=1 // pred_region
      %12 = vsyncadd [#allocation3], 0
      %s13 = sshll.u32 %s0, 4
      %s14 = int_to_ptr.hbm [resolvable:$true] %s13
      %s15 = sshll.u32 [#allocation2], 4
      %s16 = int_to_ptr.vmem [resolvable:$true] %s15
      %21 = dma.hbm_to_vmem [thread:$0]  %s14, 7168, %s16, [#allocation3], 1024, 1024, 64
    $region5: #{tpu_custom_call.1} parent=1 // pred_fallthru
      _
    // Predicated region
    $region6: #{tpu_custom_call.1} parent=1 // pred_check
      _
    $region7: #{tpu_custom_call.1} parent=1 // pred_check_branch
      %23 = sbr.rel (0) target = $region9
    $region8: #{tpu_custom_call.1} parent=1 // pred_region
      %25 = vsyncadd [#allocation5], 0
      %s27 = sshll.u32 %s1, 4
      %s28 = int_to_ptr.hbm [resolvable:$true] %s27
      %s29 = sshll.u32 [#allocation4], 4
      %s30 = int_to_ptr.vmem [resolvable:$true] %s29
      %32 = dma.hbm_to_vmem [thread:$0]  %s28, 128, %s30, [#allocation5]
    $region9: #{tpu_custom_call.1} parent=1 // pred_fallthru
      _
    // Predicated region
    $region10: #{tpu_custom_call.1} parent=1 // pred_check
      _
    $region11: #{tpu_custom_call.1} parent=1 // pred_check_branch
      %34 = sbr.rel (0) target = $region13
    $region12: #{tpu_custom_call.1} parent=1 // pred_region
      %36 = dma.done [#allocation3], 7168
    $region13: #{tpu_custom_call.1} parent=1 // pred_fallthru
      _
    // Predicated region
    $region14: #{tpu_custom_call.1} parent=1 // pred_check
      _
    $region15: #{tpu_custom_call.1} parent=1 // pred_check_branch
      %38 = sbr.rel (0) target = $region17
    $region16: #{tpu_custom_call.1} parent=1 // pred_region
      %40 = dma.done [#allocation5], 128
    $region17: #{tpu_custom_call.1} parent=1 // pred_fallthru
      _
    %v41 = vld [vmem:[#allocation2] sm:$0xff]
    %v42 = vld [vmem:[#allocation2 + $0x8] sm:$0xff]
    %v43 = vld [vmem:[#allocation2 + $0x10] sm:$0xff]
    %v44 = vld [vmem:[#allocation2 + $0x18] sm:$0xff]
    %v45 = vld [vmem:[#allocation2 + $0x20] sm:$0xff]
    %v46 = vld [vmem:[#allocation2 + $0x28] sm:$0xff]
    %v47 = vld [vmem:[#allocation2 + $0x30] sm:$0xff]
    %v48 = vld [vmem:[#allocation2 + $0x38] sm:$0xff]
    %v49 = vld [vmem:[#allocation2 + $0x40] sm:$0xff]
    %v50 = vld [vmem:[#allocation2 + $0x48] sm:$0xff]
    %v51 = vld [vmem:[#allocation2 + $0x50] sm:$0xff]
    %v52 = vld [vmem:[#allocation2 + $0x58] sm:$0xff]
    %v53 = vld [vmem:[#allocation2 + $0x60] sm:$0xff]
    %v54 = vld [vmem:[#allocation2 + $0x68] sm:$0xff]
    %v55 = vld [vmem:[#allocation2 + $0x70] sm:$0xff]
    %v56 = vld [vmem:[#allocation2 + $0x78] sm:$0xff]
    %v57 = vld [vmem:[#allocation2 + $0x80] sm:$0xff]
    %v58 = vld [vmem:[#allocation2 + $0x88] sm:$0xff]
    %v59 = vld [vmem:[#allocation2 + $0x90] sm:$0xff]
    %v60 = vld [vmem:[#allocation2 + $0x98] sm:$0xff]
    %v61 = vld [vmem:[#allocation2 + $0xa0] sm:$0xff]
    %v62 = vld [vmem:[#allocation2 + $0xa8] sm:$0xff]
    %v63 = vld [vmem:[#allocation2 + $0xb0] sm:$0xff]
    %v64 = vld [vmem:[#allocation2 + $0xb8] sm:$0xff]
    %v65 = vld [vmem:[#allocation2 + $0xc0] sm:$0xff]
    %v66 = vld [vmem:[#allocation2 + $0xc8] sm:$0xff]
    %v67 = vld [vmem:[#allocation2 + $0xd0] sm:$0xff]
    %v68 = vld [vmem:[#allocation2 + $0xd8] sm:$0xff]
    %v69 = vld [vmem:[#allocation2 + $0xe0] sm:$0xff]
    %v70 = vld [vmem:[#allocation2 + $0xe8] sm:$0xff]
    %v71 = vld [vmem:[#allocation2 + $0xf0] sm:$0xff]
    %v72 = vld [vmem:[#allocation2 + $0xf8] sm:$0xff]
    %v73 = vld [vmem:[#allocation2 + $0x100] sm:$0xff]
    %v74 = vld [vmem:[#allocation2 + $0x108] sm:$0xff]
    %v75 = vld [vmem:[#allocation2 + $0x110] sm:$0xff]
    %v76 = vld [vmem:[#allocation2 + $0x118] sm:$0xff]
    %v77 = vld [vmem:[#allocation2 + $0x120] sm:$0xff]
    %v78 = vld [vmem:[#allocation2 + $0x128] sm:$0xff]
    %v79 = vld [vmem:[#allocation2 + $0x130] sm:$0xff]
    %v80 = vld [vmem:[#allocation2 + $0x138] sm:$0xff]
    %v81 = vld [vmem:[#allocation2 + $0x140] sm:$0xff]
    %v82 = vld [vmem:[#allocation2 + $0x148] sm:$0xff]
    %v83 = vld [vmem:[#allocation2 + $0x150] sm:$0xff]
    %v84 = vld [vmem:[#allocation2 + $0x158] sm:$0xff]
    %v85 = vld [vmem:[#allocation2 + $0x160] sm:$0xff]
    %v86 = vld [vmem:[#allocation2 + $0x168] sm:$0xff]
    %v87 = vld [vmem:[#allocation2 + $0x170] sm:$0xff]
    %v88 = vld [vmem:[#allocation2 + $0x178] sm:$0xff]
    %v89 = vld [vmem:[#allocation2 + $0x180] sm:$0x1]
    %v90 = vld [vmem:[#allocation2 + $0x188] sm:$0x1]
    %v91 = vld [vmem:[#allocation2 + $0x190] sm:$0x1]
    %v92 = vld [vmem:[#allocation2 + $0x198] sm:$0x1]
    %v93 = vld [vmem:[#allocation2 + $0x1a0] sm:$0x1]
    %v94 = vld [vmem:[#allocation2 + $0x1a8] sm:$0x1]
    %v95 = vld [vmem:[#allocation2 + $0x1b0] sm:$0x1]
    %v96 = vld [vmem:[#allocation2 + $0x1b8] sm:$0x1]
    %v97 = vld [vmem:[#allocation4] sm:$0xff]
    %v99 = vperm.slane %v97, 0
    %v100 = vperm.slane %v97, 1
    %v101 = vperm.slane %v97, 2
    %v102 = vperm.slane %v97, 3
    %v103 = vperm.slane %v97, 4
    %v104 = vperm.slane %v97, 5
    %v105 = vperm.slane %v97, 6
    %v106 = vperm.slane %v97, 7
    %v115 = vmul.f32 %v41, %v99
    %v116 = vmul.f32 %v42, %v100
    %v117 = vmul.f32 %v43, %v101
    %v118 = vmul.f32 %v44, %v102
    %v119 = vmul.f32 %v45, %v103
    %v120 = vmul.f32 %v46, %v104
    %v121 = vmul.f32 %v47, %v105
    %v122 = vmul.f32 %v48, %v106
    %v123 = vmul.f32 %v49, %v99
    %v124 = vmul.f32 %v50, %v100
    %v125 = vmul.f32 %v51, %v101
    %v126 = vmul.f32 %v52, %v102
    %v127 = vmul.f32 %v53, %v103
    %v128 = vmul.f32 %v54, %v104
    %v129 = vmul.f32 %v55, %v105
    %v130 = vmul.f32 %v56, %v106
    %v131 = vmul.f32 %v57, %v99
    %v132 = vmul.f32 %v58, %v100
    %v133 = vmul.f32 %v59, %v101
    %v134 = vmul.f32 %v60, %v102
    %v135 = vmul.f32 %v61, %v103
    %v136 = vmul.f32 %v62, %v104
    %v137 = vmul.f32 %v63, %v105
    %v138 = vmul.f32 %v64, %v106
    %v139 = vmul.f32 %v65, %v99
    %v140 = vmul.f32 %v66, %v100
    %v141 = vmul.f32 %v67, %v101
    %v142 = vmul.f32 %v68, %v102
    %v143 = vmul.f32 %v69, %v103
    %v144 = vmul.f32 %v70, %v104
    %v145 = vmul.f32 %v71, %v105
    %v146 = vmul.f32 %v72, %v106
    %v147 = vmul.f32 %v73, %v99
    %v148 = vmul.f32 %v74, %v100
    %v149 = vmul.f32 %v75, %v101
    %v150 = vmul.f32 %v76, %v102
    %v151 = vmul.f32 %v77, %v103
    %v152 = vmul.f32 %v78, %v104
    %v153 = vmul.f32 %v79, %v105
    %v154 = vmul.f32 %v80, %v106
    %v155 = vmul.f32 %v81, %v99
    %v156 = vmul.f32 %v82, %v100
    %v157 = vmul.f32 %v83, %v101
    %v158 = vmul.f32 %v84, %v102
    %v159 = vmul.f32 %v85, %v103
    %v160 = vmul.f32 %v86, %v104
    %v161 = vmul.f32 %v87, %v105
    %v162 = vmul.f32 %v88, %v106
    %v163 = vmul.f32 %v89, %v99
    %v164 = vmul.f32 %v90, %v100
    %v165 = vmul.f32 %v91, %v101
    %v166 = vmul.f32 %v92, %v102
    %v167 = vmul.f32 %v93, %v103
    %v168 = vmul.f32 %v94, %v104
    %v169 = vmul.f32 %v95, %v105
    %v170 = vmul.f32 %v96, %v106
    %171 = vxpose.xlu0.b32.start [1/16] %v115, 128
    %172 = vxpose.xlu0.b32.cont [2/16] %v123, 128
    %173 = vxpose.xlu0.b32.cont [3/16] %v131, 128
    %174 = vxpose.xlu0.b32.cont [4/16] %v139, 128
    %175 = vxpose.xlu0.b32.cont [5/16] %v147, 128
    %176 = vxpose.xlu0.b32.cont [6/16] %v155, 128
    %177 = vxpose.xlu0.b32.cont [7/16] %v163, 128
    %178 = vxpose.xlu0.b32.cont [8/16] 0.0, 128
    %179 = vxpose.xlu0.b32.cont [9/16] 0.0, 128
    %180 = vxpose.xlu0.b32.cont [10/16] 0.0, 128
    %181 = vxpose.xlu0.b32.cont [11/16] 0.0, 128
    %182 = vxpose.xlu0.b32.cont [12/16] 0.0, 128
    %183 = vxpose.xlu0.b32.cont [13/16] 0.0, 128
    %184 = vxpose.xlu0.b32.cont [14/16] 0.0, 128
    %185 = vxpose.xlu0.b32.cont [15/16] 0.0, 128
    %186 = vxpose.xlu0.b32.end [16/16] 0.0, 128
    %v187 = vpop.trf.xlu0
    %v188 = vpop.trf.xlu0
    %v189 = vpop.trf.xlu0
    %v190 = vpop.trf.xlu0
    %v191 = vpop.trf.xlu0
    %v192 = vpop.trf.xlu0
    %v193 = vpop.trf.xlu0
    %v194 = vpop.trf.xlu0
    %v195 = vpop.trf.xlu0
    %v196 = vpop.trf.xlu0
    %v197 = vpop.trf.xlu0
    %v198 = vpop.trf.xlu0
    %v199 = vpop.trf.xlu0
    %v200 = vpop.trf.xlu0
    %v201 = vpop.trf.xlu0
    %v202 = vpop.trf.xlu0
    %203 = vxpose.xlu0.b32.start [1/16] %v116, 128
    %204 = vxpose.xlu0.b32.cont [2/16] %v124, 128
    %205 = vxpose.xlu0.b32.cont [3/16] %v132, 128
    %206 = vxpose.xlu0.b32.cont [4/16] %v140, 128
    %207 = vxpose.xlu0.b32.cont [5/16] %v148, 128
    %208 = vxpose.xlu0.b32.cont [6/16] %v156, 128
    %209 = vxpose.xlu0.b32.cont [7/16] %v164, 128
    %210 = vxpose.xlu0.b32.cont [8/16] 0.0, 128
    %211 = vxpose.xlu0.b32.cont [9/16] 0.0, 128
    %212 = vxpose.xlu0.b32.cont [10/16] 0.0, 128
    %213 = vxpose.xlu0.b32.cont [11/16] 0.0, 128
    %214 = vxpose.xlu0.b32.cont [12/16] 0.0, 128
    %215 = vxpose.xlu0.b32.cont [13/16] 0.0, 128
    %216 = vxpose.xlu0.b32.cont [14/16] 0.0, 128
    %217 = vxpose.xlu0.b32.cont [15/16] 0.0, 128
    %218 = vxpose.xlu0.b32.end [16/16] 0.0, 128
    %v219 = vpop.trf.xlu0
    %v220 = vpop.trf.xlu0
    %v221 = vpop.trf.xlu0
    %v222 = vpop.trf.xlu0
    %v223 = vpop.trf.xlu0
    %v224 = vpop.trf.xlu0
    %v225 = vpop.trf.xlu0
    %v226 = vpop.trf.xlu0
    %v227 = vpop.trf.xlu0
    %v228 = vpop.trf.xlu0
    %v229 = vpop.trf.xlu0
    %v230 = vpop.trf.xlu0
    %v231 = vpop.trf.xlu0
    %v232 = vpop.trf.xlu0
    %v233 = vpop.trf.xlu0
    %v234 = vpop.trf.xlu0
    %235 = vxpose.xlu0.b32.start [1/16] %v117, 128
    %236 = vxpose.xlu0.b32.cont [2/16] %v125, 128
    %237 = vxpose.xlu0.b32.cont [3/16] %v133, 128
    %238 = vxpose.xlu0.b32.cont [4/16] %v141, 128
    %239 = vxpose.xlu0.b32.cont [5/16] %v149, 128
    %240 = vxpose.xlu0.b32.cont [6/16] %v157, 128
    %241 = vxpose.xlu0.b32.cont [7/16] %v165, 128
    %242 = vxpose.xlu0.b32.cont [8/16] 0.0, 128
    %243 = vxpose.xlu0.b32.cont [9/16] 0.0, 128
    %244 = vxpose.xlu0.b32.cont [10/16] 0.0, 128
    %245 = vxpose.xlu0.b32.cont [11/16] 0.0, 128
    %246 = vxpose.xlu0.b32.cont [12/16] 0.0, 128
    %247 = vxpose.xlu0.b32.cont [13/16] 0.0, 128
    %248 = vxpose.xlu0.b32.cont [14/16] 0.0, 128
    %249 = vxpose.xlu0.b32.cont [15/16] 0.0, 128
    %250 = vxpose.xlu0.b32.end [16/16] 0.0, 128
    %v251 = vpop.trf.xlu0
    %v252 = vpop.trf.xlu0
    %v253 = vpop.trf.xlu0
    %v254 = vpop.trf.xlu0
    %v255 = vpop.trf.xlu0
    %v256 = vpop.trf.xlu0
    %v257 = vpop.trf.xlu0
    %v258 = vpop.trf.xlu0
    %v259 = vpop.trf.xlu0
    %v260 = vpop.trf.xlu0
    %v261 = vpop.trf.xlu0
    %v262 = vpop.trf.xlu0
    %v263 = vpop.trf.xlu0
    %v264 = vpop.trf.xlu0
    %v265 = vpop.trf.xlu0
    %v266 = vpop.trf.xlu0
    %267 = vxpose.xlu0.b32.start [1/16] %v118, 128
    %268 = vxpose.xlu0.b32.cont [2/16] %v126, 128
    %269 = vxpose.xlu0.b32.cont [3/16] %v134, 128
    %270 = vxpose.xlu0.b32.cont [4/16] %v142, 128
    %271 = vxpose.xlu0.b32.cont [5/16] %v150, 128
    %272 = vxpose.xlu0.b32.cont [6/16] %v158, 128
    %273 = vxpose.xlu0.b32.cont [7/16] %v166, 128
    %274 = vxpose.xlu0.b32.cont [8/16] 0.0, 128
    %275 = vxpose.xlu0.b32.cont [9/16] 0.0, 128
    %276 = vxpose.xlu0.b32.cont [10/16] 0.0, 128
    %277 = vxpose.xlu0.b32.cont [11/16] 0.0, 128
    %278 = vxpose.xlu0.b32.cont [12/16] 0.0, 128
    %279 = vxpose.xlu0.b32.cont [13/16] 0.0, 128
    %280 = vxpose.xlu0.b32.cont [14/16] 0.0, 128
    %281 = vxpose.xlu0.b32.cont [15/16] 0.0, 128
    %282 = vxpose.xlu0.b32.end [16/16] 0.0, 128
    %v283 = vpop.trf.xlu0
    %v284 = vpop.trf.xlu0
    %v285 = vpop.trf.xlu0
    %v286 = vpop.trf.xlu0
    %v287 = vpop.trf.xlu0
    %v288 = vpop.trf.xlu0
    %v289 = vpop.trf.xlu0
    %v290 = vpop.trf.xlu0
    %v291 = vpop.trf.xlu0
    %v292 = vpop.trf.xlu0
    %v293 = vpop.trf.xlu0
    %v294 = vpop.trf.xlu0
    %v295 = vpop.trf.xlu0
    %v296 = vpop.trf.xlu0
    %v297 = vpop.trf.xlu0
    %v298 = vpop.trf.xlu0
    %299 = vxpose.xlu0.b32.start [1/16] %v119, 128
    %300 = vxpose.xlu0.b32.cont [2/16] %v127, 128
    %301 = vxpose.xlu0.b32.cont [3/16] %v135, 128
    %302 = vxpose.xlu0.b32.cont [4/16] %v143, 128
    %303 = vxpose.xlu0.b32.cont [5/16] %v151, 128
    %304 = vxpose.xlu0.b32.cont [6/16] %v159, 128
    %305 = vxpose.xlu0.b32.cont [7/16] %v167, 128
    %306 = vxpose.xlu0.b32.cont [8/16] 0.0, 128
    %307 = vxpose.xlu0.b32.cont [9/16] 0.0, 128
    %308 = vxpose.xlu0.b32.cont [10/16] 0.0, 128
    %309 = vxpose.xlu0.b32.cont [11/16] 0.0, 128
    %310 = vxpose.xlu0.b32.cont [12/16] 0.0, 128
    %311 = vxpose.xlu0.b32.cont [13/16] 0.0, 128
    %312 = vxpose.xlu0.b32.cont [14/16] 0.0, 128
    %313 = vxpose.xlu0.b32.cont [15/16] 0.0, 128
    %314 = vxpose.xlu0.b32.end [16/16] 0.0, 128
    %v315 = vpop.trf.xlu0
    %v316 = vpop.trf.xlu0
    %v317 = vpop.trf.xlu0
    %v318 = vpop.trf.xlu0
    %v319 = vpop.trf.xlu0
    %v320 = vpop.trf.xlu0
    %v321 = vpop.trf.xlu0
    %v322 = vpop.trf.xlu0
    %v323 = vpop.trf.xlu0
    %v324 = vpop.trf.xlu0
    %v325 = vpop.trf.xlu0
    %v326 = vpop.trf.xlu0
    %v327 = vpop.trf.xlu0
    %v328 = vpop.trf.xlu0
    %v329 = vpop.trf.xlu0
    %v330 = vpop.trf.xlu0
    %331 = vxpose.xlu0.b32.start [1/16] %v120, 128
    %332 = vxpose.xlu0.b32.cont [2/16] %v128, 128
    %333 = vxpose.xlu0.b32.cont [3/16] %v136, 128
    %334 = vxpose.xlu0.b32.cont [4/16] %v144, 128
    %335 = vxpose.xlu0.b32.cont [5/16] %v152, 128
    %336 = vxpose.xlu0.b32.cont [6/16] %v160, 128
    %337 = vxpose.xlu0.b32.cont [7/16] %v168, 128
    %338 = vxpose.xlu0.b32.cont [8/16] 0.0, 128
    %339 = vxpose.xlu0.b32.cont [9/16] 0.0, 128
    %340 = vxpose.xlu0.b32.cont [10/16] 0.0, 128
    %341 = vxpose.xlu0.b32.cont [11/16] 0.0, 128
    %342 = vxpose.xlu0.b32.cont [12/16] 0.0, 128
    %343 = vxpose.xlu0.b32.cont [13/16] 0.0, 128
    %344 = vxpose.xlu0.b32.cont [14/16] 0.0, 128
    %345 = vxpose.xlu0.b32.cont [15/16] 0.0, 128
    %346 = vxpose.xlu0.b32.end [16/16] 0.0, 128
    %v347 = vpop.trf.xlu0
    %v348 = vpop.trf.xlu0
    %v349 = vpop.trf.xlu0
    %v350 = vpop.trf.xlu0
    %v351 = vpop.trf.xlu0
    %v352 = vpop.trf.xlu0
    %v353 = vpop.trf.xlu0
    %v354 = vpop.trf.xlu0
    %v355 = vpop.trf.xlu0
    %v356 = vpop.trf.xlu0
    %v357 = vpop.trf.xlu0
    %v358 = vpop.trf.xlu0
    %v359 = vpop.trf.xlu0
    %v360 = vpop.trf.xlu0
    %v361 = vpop.trf.xlu0
    %v362 = vpop.trf.xlu0
    %363 = vxpose.xlu0.b32.start [1/16] %v121, 128
    %364 = vxpose.xlu0.b32.cont [2/16] %v129, 128
    %365 = vxpose.xlu0.b32.cont [3/16] %v137, 128
    %366 = vxpose.xlu0.b32.cont [4/16] %v145, 128
    %367 = vxpose.xlu0.b32.cont [5/16] %v153, 128
    %368 = vxpose.xlu0.b32.cont [6/16] %v161, 128
    %369 = vxpose.xlu0.b32.cont [7/16] %v169, 128
    %370 = vxpose.xlu0.b32.cont [8/16] 0.0, 128
    %371 = vxpose.xlu0.b32.cont [9/16] 0.0, 128
    %372 = vxpose.xlu0.b32.cont [10/16] 0.0, 128
    %373 = vxpose.xlu0.b32.cont [11/16] 0.0, 128
    %374 = vxpose.xlu0.b32.cont [12/16] 0.0, 128
    %375 = vxpose.xlu0.b32.cont [13/16] 0.0, 128
    %376 = vxpose.xlu0.b32.cont [14/16] 0.0, 128
    %377 = vxpose.xlu0.b32.cont [15/16] 0.0, 128
    %378 = vxpose.xlu0.b32.end [16/16] 0.0, 128
    %v379 = vpop.trf.xlu0
    %v380 = vpop.trf.xlu0
    %v381 = vpop.trf.xlu0
    %v382 = vpop.trf.xlu0
    %v383 = vpop.trf.xlu0
    %v384 = vpop.trf.xlu0
    %v385 = vpop.trf.xlu0
    %v386 = vpop.trf.xlu0
    %v387 = vpop.trf.xlu0
    %v388 = vpop.trf.xlu0
    %v389 = vpop.trf.xlu0
    %v390 = vpop.trf.xlu0
    %v391 = vpop.trf.xlu0
    %v392 = vpop.trf.xlu0
    %v393 = vpop.trf.xlu0
    %v394 = vpop.trf.xlu0
    %395 = vxpose.xlu0.b32.start [1/16] %v122, 128
    %396 = vxpose.xlu0.b32.cont [2/16] %v130, 128
    %397 = vxpose.xlu0.b32.cont [3/16] %v138, 128
    %398 = vxpose.xlu0.b32.cont [4/16] %v146, 128
    %399 = vxpose.xlu0.b32.cont [5/16] %v154, 128
    %400 = vxpose.xlu0.b32.cont [6/16] %v162, 128
    %401 = vxpose.xlu0.b32.cont [7/16] %v170, 128
    %402 = vxpose.xlu0.b32.cont [8/16] 0.0, 128
    %403 = vxpose.xlu0.b32.cont [9/16] 0.0, 128
    %404 = vxpose.xlu0.b32.cont [10/16] 0.0, 128
    %405 = vxpose.xlu0.b32.cont [11/16] 0.0, 128
    %406 = vxpose.xlu0.b32.cont [12/16] 0.0, 128
    %407 = vxpose.xlu0.b32.cont [13/16] 0.0, 128
    %408 = vxpose.xlu0.b32.cont [14/16] 0.0, 128
    %409 = vxpose.xlu0.b32.cont [15/16] 0.0, 128
    %410 = vxpose.xlu0.b32.end [16/16] 0.0, 128
    %v411 = vpop.trf.xlu0
    %v412 = vpop.trf.xlu0
    %v413 = vpop.trf.xlu0
    %v414 = vpop.trf.xlu0
    %v415 = vpop.trf.xlu0
    %v416 = vpop.trf.xlu0
    %v417 = vpop.trf.xlu0
    %v418 = vpop.trf.xlu0
    %v419 = vpop.trf.xlu0
    %v420 = vpop.trf.xlu0
    %v421 = vpop.trf.xlu0
    %v422 = vpop.trf.xlu0
    %v423 = vpop.trf.xlu0
    %v424 = vpop.trf.xlu0
    %v425 = vpop.trf.xlu0
    %v426 = vpop.trf.xlu0
    %vm427 = vcmask 400384
    %428 = vst.msk [vmem:[%s2] sm:$0xff] %vm427, %v187
    %429 = vst.msk [vmem:[%s2 + $0x8] sm:$0xff] %vm427, %v188
    %430 = vst.msk [vmem:[%s2 + $0x10] sm:$0xff] %vm427, %v189
    %431 = vst.msk [vmem:[%s2 + $0x18] sm:$0xff] %vm427, %v190
    %432 = vst.msk [vmem:[%s2 + $0x20] sm:$0xff] %vm427, %v191
    %433 = vst.msk [vmem:[%s2 + $0x28] sm:$0xff] %vm427, %v192
    %434 = vst.msk [vmem:[%s2 + $0x30] sm:$0xff] %vm427, %v193
    %435 = vst.msk [vmem:[%s2 + $0x38] sm:$0xff] %vm427, %v194
    %436 = vst.msk [vmem:[%s2 + $0x40] sm:$0xff] %vm427, %v195
    %437 = vst.msk [vmem:[%s2 + $0x48] sm:$0xff] %vm427, %v196
    %438 = vst.msk [vmem:[%s2 + $0x50] sm:$0xff] %vm427, %v197
    %439 = vst.msk [vmem:[%s2 + $0x58] sm:$0xff] %vm427, %v198
    %440 = vst.msk [vmem:[%s2 + $0x60] sm:$0xff] %vm427, %v199
    %441 = vst.msk [vmem:[%s2 + $0x68] sm:$0xff] %vm427, %v200
    %442 = vst.msk [vmem:[%s2 + $0x70] sm:$0xff] %vm427, %v201
    %443 = vst.msk [vmem:[%s2 + $0x78] sm:$0xff] %vm427, %v202
    %444 = vst.msk [vmem:[%s2 + $0x80] sm:$0xff] %vm427, %v219
    %445 = vst.msk [vmem:[%s2 + $0x88] sm:$0xff] %vm427, %v220
    %446 = vst.msk [vmem:[%s2 + $0x90] sm:$0xff] %vm427, %v221
    %447 = vst.msk [vmem:[%s2 + $0x98] sm:$0xff] %vm427, %v222
    %448 = vst.msk [vmem:[%s2 + $0xa0] sm:$0xff] %vm427, %v223
    %449 = vst.msk [vmem:[%s2 + $0xa8] sm:$0xff] %vm427, %v224
    %450 = vst.msk [vmem:[%s2 + $0xb0] sm:$0xff] %vm427, %v225
    %451 = vst.msk [vmem:[%s2 + $0xb8] sm:$0xff] %vm427, %v226
    %452 = vst.msk [vmem:[%s2 + $0xc0] sm:$0xff] %vm427, %v227
    %453 = vst.msk [vmem:[%s2 + $0xc8] sm:$0xff] %vm427, %v228
    %454 = vst.msk [vmem:[%s2 + $0xd0] sm:$0xff] %vm427, %v229
    %455 = vst.msk [vmem:[%s2 + $0xd8] sm:$0xff] %vm427, %v230
    %456 = vst.msk [vmem:[%s2 + $0xe0] sm:$0xff] %vm427, %v231
    %457 = vst.msk [vmem:[%s2 + $0xe8] sm:$0xff] %vm427, %v232
    %458 = vst.msk [vmem:[%s2 + $0xf0] sm:$0xff] %vm427, %v233
    %459 = vst.msk [vmem:[%s2 + $0xf8] sm:$0xff] %vm427, %v234
    %460 = vst.msk [vmem:[%s2 + $0x100] sm:$0xff] %vm427, %v251
    %461 = vst.msk [vmem:[%s2 + $0x108] sm:$0xff] %vm427, %v252
    %462 = vst.msk [vmem:[%s2 + $0x110] sm:$0xff] %vm427, %v253
    %463 = vst.msk [vmem:[%s2 + $0x118] sm:$0xff] %vm427, %v254
    %464 = vst.msk [vmem:[%s2 + $0x120] sm:$0xff] %vm427, %v255
    %465 = vst.msk [vmem:[%s2 + $0x128] sm:$0xff] %vm427, %v256
    %466 = vst.msk [vmem:[%s2 + $0x130] sm:$0xff] %vm427, %v257
    %467 = vst.msk [vmem:[%s2 + $0x138] sm:$0xff] %vm427, %v258
    %468 = vst.msk [vmem:[%s2 + $0x140] sm:$0xff] %vm427, %v259
    %469 = vst.msk [vmem:[%s2 + $0x148] sm:$0xff] %vm427, %v260
    %470 = vst.msk [vmem:[%s2 + $0x150] sm:$0xff] %vm427, %v261
    %471 = vst.msk [vmem:[%s2 + $0x158] sm:$0xff] %vm427, %v262
    %472 = vst.msk [vmem:[%s2 + $0x160] sm:$0xff] %vm427, %v263
    %473 = vst.msk [vmem:[%s2 + $0x168] sm:$0xff] %vm427, %v264
    %474 = vst.msk [vmem:[%s2 + $0x170] sm:$0xff] %vm427, %v265
    %475 = vst.msk [vmem:[%s2 + $0x178] sm:$0xff] %vm427, %v266
    %476 = vst.msk [vmem:[%s2 + $0x180] sm:$0xff] %vm427, %v283
    %477 = vst.msk [vmem:[%s2 + $0x188] sm:$0xff] %vm427, %v284
    %478 = vst.msk [vmem:[%s2 + $0x190] sm:$0xff] %vm427, %v285
    %479 = vst.msk [vmem:[%s2 + $0x198] sm:$0xff] %vm427, %v286
    %480 = vst.msk [vmem:[%s2 + $0x1a0] sm:$0xff] %vm427, %v287
    %481 = vst.msk [vmem:[%s2 + $0x1a8] sm:$0xff] %vm427, %v288
    %482 = vst.msk [vmem:[%s2 + $0x1b0] sm:$0xff] %vm427, %v289
    %483 = vst.msk [vmem:[%s2 + $0x1b8] sm:$0xff] %vm427, %v290
    %484 = vst.msk [vmem:[%s2 + $0x1c0] sm:$0xff] %vm427, %v291
    %485 = vst.msk [vmem:[%s2 + $0x1c8] sm:$0xff] %vm427, %v292
    %486 = vst.msk [vmem:[%s2 + $0x1d0] sm:$0xff] %vm427, %v293
    %487 = vst.msk [vmem:[%s2 + $0x1d8] sm:$0xff] %vm427, %v294
    %488 = vst.msk [vmem:[%s2 + $0x1e0] sm:$0xff] %vm427, %v295
    %489 = vst.msk [vmem:[%s2 + $0x1e8] sm:$0xff] %vm427, %v296
    %490 = vst.msk [vmem:[%s2 + $0x1f0] sm:$0xff] %vm427, %v297
    %491 = vst.msk [vmem:[%s2 + $0x1f8] sm:$0xff] %vm427, %v298
    %492 = vst.msk [vmem:[%s2 + $0x200] sm:$0xff] %vm427, %v315
    %493 = vst.msk [vmem:[%s2 + $0x208] sm:$0xff] %vm427, %v316
    %494 = vst.msk [vmem:[%s2 + $0x210] sm:$0xff] %vm427, %v317
    %495 = vst.msk [vmem:[%s2 + $0x218] sm:$0xff] %vm427, %v318
    %496 = vst.msk [vmem:[%s2 + $0x220] sm:$0xff] %vm427, %v319
    %497 = vst.msk [vmem:[%s2 + $0x228] sm:$0xff] %vm427, %v320
    %498 = vst.msk [vmem:[%s2 + $0x230] sm:$0xff] %vm427, %v321
    %499 = vst.msk [vmem:[%s2 + $0x238] sm:$0xff] %vm427, %v322
    %500 = vst.msk [vmem:[%s2 + $0x240] sm:$0xff] %vm427, %v323
    %501 = vst.msk [vmem:[%s2 + $0x248] sm:$0xff] %vm427, %v324
    %502 = vst.msk [vmem:[%s2 + $0x250] sm:$0xff] %vm427, %v325
    %503 = vst.msk [vmem:[%s2 + $0x258] sm:$0xff] %vm427, %v326
    %504 = vst.msk [vmem:[%s2 + $0x260] sm:$0xff] %vm427, %v327
    %505 = vst.msk [vmem:[%s2 + $0x268] sm:$0xff] %vm427, %v328
    %506 = vst.msk [vmem:[%s2 + $0x270] sm:$0xff] %vm427, %v329
    %507 = vst.msk [vmem:[%s2 + $0x278] sm:$0xff] %vm427, %v330
    %508 = vst.msk [vmem:[%s2 + $0x280] sm:$0xff] %vm427, %v347
    %509 = vst.msk [vmem:[%s2 + $0x288] sm:$0xff] %vm427, %v348
    %510 = vst.msk [vmem:[%s2 + $0x290] sm:$0xff] %vm427, %v349
    %511 = vst.msk [vmem:[%s2 + $0x298] sm:$0xff] %vm427, %v350
    %512 = vst.msk [vmem:[%s2 + $0x2a0] sm:$0xff] %vm427, %v351
    %513 = vst.msk [vmem:[%s2 + $0x2a8] sm:$0xff] %vm427, %v352
    %514 = vst.msk [vmem:[%s2 + $0x2b0] sm:$0xff] %vm427, %v353
    %515 = vst.msk [vmem:[%s2 + $0x2b8] sm:$0xff] %vm427, %v354
    %516 = vst.msk [vmem:[%s2 + $0x2c0] sm:$0xff] %vm427, %v355
    %517 = vst.msk [vmem:[%s2 + $0x2c8] sm:$0xff] %vm427, %v356
    %518 = vst.msk [vmem:[%s2 + $0x2d0] sm:$0xff] %vm427, %v357
    %519 = vst.msk [vmem:[%s2 + $0x2d8] sm:$0xff] %vm427, %v358
    %520 = vst.msk [vmem:[%s2 + $0x2e0] sm:$0xff] %vm427, %v359
    %521 = vst.msk [vmem:[%s2 + $0x2e8] sm:$0xff] %vm427, %v360
    %522 = vst.msk [vmem:[%s2 + $0x2f0] sm:$0xff] %vm427, %v361
    %523 = vst.msk [vmem:[%s2 + $0x2f8] sm:$0xff] %vm427, %v362
    %524 = vst.msk [vmem:[%s2 + $0x300] sm:$0xff] %vm427, %v379
    %525 = vst.msk [vmem:[%s2 + $0x308] sm:$0xff] %vm427, %v380
    %526 = vst.msk [vmem:[%s2 + $0x310] sm:$0xff] %vm427, %v381
    %527 = vst.msk [vmem:[%s2 + $0x318] sm:$0xff] %vm427, %v382
    %528 = vst.msk [vmem:[%s2 + $0x320] sm:$0xff] %vm427, %v383
    %529 = vst.msk [vmem:[%s2 + $0x328] sm:$0xff] %vm427, %v384
    %530 = vst.msk [vmem:[%s2 + $0x330] sm:$0xff] %vm427, %v385
    %531 = vst.msk [vmem:[%s2 + $0x338] sm:$0xff] %vm427, %v386
    %532 = vst.msk [vmem:[%s2 + $0x340] sm:$0xff] %vm427, %v387
    %533 = vst.msk [vmem:[%s2 + $0x348] sm:$0xff] %vm427, %v388
    %534 = vst.msk [vmem:[%s2 + $0x350] sm:$0xff] %vm427, %v389
    %535 = vst.msk [vmem:[%s2 + $0x358] sm:$0xff] %vm427, %v390
    %536 = vst.msk [vmem:[%s2 + $0x360] sm:$0xff] %vm427, %v391
    %537 = vst.msk [vmem:[%s2 + $0x368] sm:$0xff] %vm427, %v392
    %538 = vst.msk [vmem:[%s2 + $0x370] sm:$0xff] %vm427, %v393
    %539 = vst.msk [vmem:[%s2 + $0x378] sm:$0xff] %vm427, %v394
    %540 = vst.msk [vmem:[%s2 + $0x380] sm:$0xff] %vm427, %v411
    %541 = vst.msk [vmem:[%s2 + $0x388] sm:$0xff] %vm427, %v412
    %542 = vst.msk [vmem:[%s2 + $0x390] sm:$0xff] %vm427, %v413
    %543 = vst.msk [vmem:[%s2 + $0x398] sm:$0xff] %vm427, %v414
    %544 = vst.msk [vmem:[%s2 + $0x3a0] sm:$0xff] %vm427, %v415
    %545 = vst.msk [vmem:[%s2 + $0x3a8] sm:$0xff] %vm427, %v416
    %546 = vst.msk [vmem:[%s2 + $0x3b0] sm:$0xff] %vm427, %v417
    %547 = vst.msk [vmem:[%s2 + $0x3b8] sm:$0xff] %vm427, %v418
    %548 = vst.msk [vmem:[%s2 + $0x3c0] sm:$0xff] %vm427, %v419
    %549 = vst.msk [vmem:[%s2 + $0x3c8] sm:$0xff] %vm427, %v420
    %550 = vst.msk [vmem:[%s2 + $0x3d0] sm:$0xff] %vm427, %v421
    %551 = vst.msk [vmem:[%s2 + $0x3d8] sm:$0xff] %vm427, %v422
    %552 = vst.msk [vmem:[%s2 + $0x3e0] sm:$0xff] %vm427, %v423
    %553 = vst.msk [vmem:[%s2 + $0x3e8] sm:$0xff] %vm427, %v424
    %554 = vst.msk [vmem:[%s2 + $0x3f0] sm:$0xff] %vm427, %v425
    %555 = vst.msk [vmem:[%s2 + $0x3f8] sm:$0xff] %vm427, %v426
    // Predicated region
    $region18: #{tpu_custom_call.1} parent=1 // pred_check
      _
    $region19: #{tpu_custom_call.1} parent=1 // pred_check_branch
      %557 = sbr.rel (0) target = $region21
    $region20: #{tpu_custom_call.1} parent=1 // pred_region
      _
    $region21: #{tpu_custom_call.1} parent=1 // pred_fallthru
      _
    // Predicated region
    $region22: #{tpu_custom_call.1} parent=1 // pred_check
      _
    $region23: #{tpu_custom_call.1} parent=1 // pred_check_branch
      %559 = sbr.rel (0) target = $region25
    $region24: #{tpu_custom_call.1} parent=1 // pred_region
      _
    $region25: #{tpu_custom_call.1} parent=1 // pred_fallthru
      _
    %560 = vsyncpa [#allocation3], 1
    %561 = vsyncpa [#allocation5], 1

</llo_original>
